<compile_context>
chip_gen: v7x
topology: tpu7x:2x2x1
jax: 0.10.0
libtpu: 0.0.40
codegen_flags: <defaults>
</compile_context>

<pallas_src>
import functools

import jax
import jax.numpy as jnp
from jax.experimental import pallas as pl
from jax.experimental.pallas import tpu as pltpu


def _cdiv(a, b):
    return -(-a // b)


def _round_up(a, b):
    return _cdiv(a, b) * b


def _layernorm_kernel(x_ref, gb_ref, o_ref, *, eps, feat):
    x = x_ref[...].astype(jnp.float32)            # (tile_rows, F)
    gb = gb_ref[...].astype(jnp.float32)          # (2, F): row 0 = gamma, row 1 = beta
    gamma = gb[0:1, :]
    beta = gb[1:2, :]

    mean = jnp.mean(x, axis=-1, keepdims=True)
    d = x - mean
    # PyTorch tensor.std() is unbiased (divides by N-1); feat == 1 gives NaN,
    # same as torch — intentional parity with the reference module.
    var = jnp.sum(d * d, axis=-1, keepdims=True) * (1.0 / (feat - 1))
    std = jnp.sqrt(var)
    # eps added to std (outside sqrt) to match the module. Exact reciprocal:
    # only tile_rows scalars per step, so the exact form is essentially free
    # and avoids ~1e-3 relative error on f32 outputs.
    inv = pl.reciprocal(std + eps, approx=False)
    o_ref[...] = (gamma * (d * inv) + beta).astype(o_ref.dtype)


# Row alignment keeps sub-32-bit input tiles sublane-packed and satisfies the
# (8, 128) block-shape rule for every supported dtype.
_ROW_ALIGN = 16


def _choose_tile_rows(n_rows, feat, itemsize, target_bytes=4 * 1024 * 1024):
    """~4 MiB of input per grid step (amortizes ~0.35 us/step pipeline overhead
    on fast-HBM chips), capped so the grid still has ~8 steps when the input is
    large enough (v7x needs >= 2 parallel steps to use both TensorCores)."""
    bytes_per_row = max(feat * itemsize, 1)
    rows = max(_ROW_ALIGN, (target_bytes // bytes_per_row) // _ROW_ALIGN * _ROW_ALIGN)
    cap = max(_ROW_ALIGN, _round_up(_cdiv(n_rows, 8), _ROW_ALIGN))
    return min(rows, cap)


def layer_norm(x, gamma, beta, eps=1e-6, tile_rows=None):
    """x: (..., F); gamma, beta: (F,)"""
    orig_shape = x.shape
    feat = orig_shape[-1]
    x2 = x.reshape(-1, feat)
    n_rows = x2.shape[0]

    if tile_rows is None:
        tile_rows = _choose_tile_rows(n_rows, feat, jnp.dtype(x2.dtype).itemsize)

    # Non-divisible row counts are left to Pallas' partial-block handling: the
    # last block's OOB rows read stale VMEM, compute garbage, and are dropped
    # on writeback — no extra HBM pad/slice passes.
    n_tiles = _cdiv(n_rows, tile_rows)

    # Pack gamma/beta into a single (2, F) operand: one small resident block
    # instead of two separate (1, F) DMA buffers.
    gb = jnp.stack([gamma, beta], axis=0)

    # TODO(synk): if production feature dims are < 128, pack 128//F contiguous
    # rows per block row (free wrapper reshape) + segmented in-lane reductions
    # to get lane-dense stores; typical LayerNorm F >= 512 makes this moot.

    kernel = functools.partial(_layernorm_kernel, eps=float(eps), feat=feat)

    out = pl.pallas_call(
        kernel,
        out_shape=jax.ShapeDtypeStruct((n_rows, feat), x.dtype),
        grid_spec=pltpu.PrefetchScalarGridSpec(
            num_scalar_prefetch=0,
            grid=(n_tiles,),
            in_specs=[
                pl.BlockSpec((tile_rows, feat), lambda i: (i, 0)),
                pl.BlockSpec((2, feat), lambda i: (0, 0)),
            ],
            out_specs=pl.BlockSpec((tile_rows, feat), lambda i: (i, 0)),
        ),
        compiler_params=pltpu.CompilerParams(
            dimension_semantics=("parallel",),
            # 2 in-bufs + 2 out-bufs at ~4 MiB each plus ~2 tile-sized f32
            # temps from the in-kernel upcast ~ 32 MiB; 48 MiB leaves headroom
            # and still fits v7x's 64 MiB physical VMEM (v5e/v6e have 128 MiB).
            vmem_limit_bytes=48 * 1024 * 1024,
        ),
    )(x2, gb)

    return out.reshape(orig_shape)


def _ref_layer_norm(x, gamma, beta, eps=1e-6):
    mean = jnp.mean(x, axis=-1, keepdims=True)
    std = jnp.std(x, axis=-1, keepdims=True, ddof=1)
    return gamma * (x - mean) / (std + eps) + beta


if __name__ == "__main__":
    key = jax.random.PRNGKey(0)
    batch, seq, hidden = 2, 8, 32

    x = jax.random.normal(key, (batch, seq, hidden), dtype=jnp.float32)

    # Deterministic parameters matching nn.Parameter(torch.ones/zeros(features))
    gamma = jnp.ones((hidden,), dtype=jnp.float32)
    beta = jnp.zeros((hidden,), dtype=jnp.float32)

    y = layer_norm(x, gamma, beta, eps=1e-6)
    y = jax.block_until_ready(y)
    ref = _ref_layer_norm(x, gamma, beta)
    assert y.shape == x.shape
    assert jnp.allclose(y, ref, atol=1e-4, rtol=1e-4), "mismatch vs reference"

    # Ragged-row path: 15 rows < 16-row tile -> single partial block.
    x_r = jax.random.normal(jax.random.PRNGKey(1), (3, 5, hidden), jnp.float32)
    y_r = jax.block_until_ready(layer_norm(x_r, gamma, beta, eps=1e-6))
    ref_r = _ref_layer_norm(x_r, gamma, beta)
    assert jnp.allclose(y_r, ref_r, atol=1e-4, rtol=1e-4), "ragged mismatch"

    # Multi-tile + partial-last-block path (n_rows not a tile multiple, >1 tile).
    x_m = jax.random.normal(jax.random.PRNGKey(2), (7, 300, 256), jnp.float32)
    g_m = jnp.ones((256,), dtype=jnp.float32)
    b_m = jnp.zeros((256,), dtype=jnp.float32)
    y_m = jax.block_until_ready(layer_norm(x_m, g_m, b_m, eps=1e-6))
    ref_m = _ref_layer_norm(x_m, g_m, b_m)
    assert jnp.allclose(y_m, ref_m, atol=1e-4, rtol=1e-4), "multi-tile mismatch"

    print("KERNEL_OK")
</pallas_src>

<mosaic_0001>
module attributes {stable_mosaic.version = 11 : i64} {
  func.func @_layernorm_kernel(%arg0: i32, %arg1: memref<16x32xf32, #tpu.memory_space<vmem>>, %arg2: memref<2x32xf32, #tpu.memory_space<vmem>>, %arg3: memref<16x32xf32, #tpu.memory_space<vmem>>) attributes {dimension_semantics = [#tpu.dimension_semantics<parallel>], iteration_bounds = array<i64: 1>, scalar_prefetch = 0 : i64, scratch_operands = 0 : i64, tpu.core_type = #tpu.core_type<tc>, window_params = [{transform_indices = @transform_0, window_bounds = array<i64: 16, 32>}, {pipeline_mode = #tpu.pipeline_mode<synchronous>, transform_indices = @transform_1, window_bounds = array<i64: 2, 32>}, {transform_indices = @transform_2, window_bounds = array<i64: 16, 32>}]} {
    %c0 = arith.constant 0 : index
    %c0_0 = arith.constant 0 : index
    %0 = vector.load %arg1[%c0, %c0_0] : memref<16x32xf32, #tpu.memory_space<vmem>>, vector<16x32xf32>
    %c0_1 = arith.constant 0 : index
    %c0_2 = arith.constant 0 : index
    %1 = vector.load %arg2[%c0_1, %c0_2] : memref<2x32xf32, #tpu.memory_space<vmem>>, vector<2x32xf32>
    %2 = vector.extract_strided_slice %1 {offsets = [0, 0], sizes = [1, 32], strides = [1, 1]} : vector<2x32xf32> to vector<1x32xf32>
    %3 = vector.extract_strided_slice %1 {offsets = [1, 0], sizes = [1, 32], strides = [1, 1]} : vector<2x32xf32> to vector<1x32xf32>
    %cst = arith.constant dense<0.000000e+00> : vector<16xf32>
    %4 = vector.multi_reduction <add>, %0, %cst [1] : vector<16x32xf32> to vector<16xf32>
    %5 = vector.shape_cast %4 : vector<16xf32> to vector<16x1xf32>
    %cst_3 = arith.constant 3.200000e+01 : f32
    %6 = vector.broadcast %cst_3 : f32 to vector<16x1xf32>
    %7 = arith.divf %5, %6 : vector<16x1xf32>
    %8 = vector.broadcast %7 : vector<16x1xf32> to vector<16x32xf32>
    %9 = arith.subf %0, %8 : vector<16x32xf32>
    %10 = arith.mulf %9, %9 : vector<16x32xf32>
    %cst_4 = arith.constant dense<0.000000e+00> : vector<16xf32>
    %11 = vector.multi_reduction <add>, %10, %cst_4 [1] : vector<16x32xf32> to vector<16xf32>
    %12 = vector.shape_cast %11 : vector<16xf32> to vector<16x1xf32>
    %cst_5 = arith.constant 0.0322580636 : f32
    %13 = vector.broadcast %cst_5 : f32 to vector<16x1xf32>
    %14 = arith.mulf %12, %13 : vector<16x1xf32>
    %15 = math.sqrt %14 : vector<16x1xf32>
    %cst_6 = arith.constant 9.99999997E-7 : f32
    %16 = vector.broadcast %cst_6 : f32 to vector<16x1xf32>
    %17 = arith.addf %15, %16 : vector<16x1xf32>
    %18 = tpu.reciprocal %17 : vector<16x1xf32> -> vector<16x1xf32>
    %19 = vector.broadcast %18 : vector<16x1xf32> to vector<16x32xf32>
    %20 = arith.mulf %9, %19 : vector<16x32xf32>
    %21 = vector.broadcast %2 : vector<1x32xf32> to vector<16x32xf32>
    %22 = arith.mulf %21, %20 : vector<16x32xf32>
    %23 = vector.broadcast %3 : vector<1x32xf32> to vector<16x32xf32>
    %24 = arith.addf %22, %23 : vector<16x32xf32>
    %c0_7 = arith.constant 0 : index
    %c0_8 = arith.constant 0 : index
    %25 = vector.load %arg3[%c0_7, %c0_8] : memref<16x32xf32, #tpu.memory_space<vmem>>, vector<16x32xf32>
    tpu.vector_store %arg3[%c0_7, %c0_8], %24 {strides = array<i32>} : memref<16x32xf32, #tpu.memory_space<vmem>>, vector<16x32xf32>,
    return
  }
  func.func @transform_0(%arg0: i32) -> (i32, i32) {
    %c0_i32 = arith.constant 0 : i32
    %c0_i32_0 = arith.constant 0 : i32
    return %arg0, %c0_i32 : i32, i32
  }
  func.func @transform_1(%arg0: i32) -> (i32, i32) {
    %c0_i32 = arith.constant 0 : i32
    %c0_i32_0 = arith.constant 0 : i32
    %c0_i32_1 = arith.constant 0 : i32
    return %c0_i32, %c0_i32_0 : i32, i32
  }
  func.func @transform_2(%arg0: i32) -> (i32, i32) {
    %c0_i32 = arith.constant 0 : i32
    %c0_i32_0 = arith.constant 0 : i32
    return %arg0, %c0_i32 : i32, i32
  }
}

</mosaic_0001>

<llo_original>
// kernel: tpu_custom_call.1
$region0: #{tpu_custom_call.1}
  #allocation0 [shape = 'u32[]', space=smem, size = 0x4, offset = 0x4, fixed_abs, tag = 'smem constant byte address 0x4 - core index']
  #allocation1 [shape = 'u32[144,128]{1,0:T(1,128)}', space=vmem, size = 0x12000, scoped, tag = 'internal scratch']
  %s0 = inlined_call_operand.hbm [shape: f32[16,32], index: 0, kind: input, shape index: {}]
  %s1 = inlined_call_operand.vmem [shape: f32[2,32], index: 1, kind: input, shape index: {}]
  %s2 = inlined_call_operand.hbm [shape: f32[16,32], index: 2, kind: output, shape index: {}]
  %s3 = sld [smem:[#allocation0]]
  $region22: #{tpu_custom_call.1} parent=0
    _
  %s5 = ssub.s32 1, %s3
  %s6 = scalar_select 0, %s5, %s3
  $region1: #{tpu_custom_call.1} parent=0
    #allocation2 [shape = 'u8[8192]{0}', space=vmem, size = 0x2000, scoped, tag = 'input window, operand 0, single buffered']
    #allocation3 [shape = 's32[1]{0}', space=sflag, size = 0x4, scoped, tag = 'scoped memory for tpu_custom_call.1']
    #allocation4 [shape = 's32[1]{0}', space=sflag, size = 0x4, scoped, tag = 'scoped memory for tpu_custom_call.1']
    #allocation5 [shape = 'u8[8192]{0}', space=vmem, size = 0x2000, scoped, tag = 'output window, operand 0, single buffered']
    %7 = vsyncpa [#allocation3], 0
    %8 = vsyncpa [#allocation4], 0
    // Predicated region
    $region2: #{tpu_custom_call.1} parent=1 // pred_check
      _
    $region3: #{tpu_custom_call.1} parent=1 // pred_check_branch
      %10 = sbr.rel (0) target = $region5
    $region4: #{tpu_custom_call.1} parent=1 // pred_region
      %s12 = ssub.s32 256, 256
      %13 = vsyncadd [#allocation3], %s12
      %s14 = sshll.u32 [#allocation2], 4
      %s15 = int_to_ptr.vmem [resolvable:$true] %s14
      %20 = dma.hbm_to_vmem [thread:$0]  %s0, 256, %s15, [#allocation3], 128, 128, 8
    $region5: #{tpu_custom_call.1} parent=1 // pred_fallthru
      _
    // Predicated region
    $region6: #{tpu_custom_call.1} parent=1 // pred_check
      _
    $region7: #{tpu_custom_call.1} parent=1 // pred_check_branch
      %22 = sbr.rel (0) target = $region9
    $region8: #{tpu_custom_call.1} parent=1 // pred_region
      _
    $region9: #{tpu_custom_call.1} parent=1 // pred_fallthru
      _
    // Predicated region
    $region10: #{tpu_custom_call.1} parent=1 // pred_check
      _
    $region11: #{tpu_custom_call.1} parent=1 // pred_check_branch
      %24 = sbr.rel (0) target = $region13
    $region12: #{tpu_custom_call.1} parent=1 // pred_region
      %25 = dma.done [#allocation3], 256
    $region13: #{tpu_custom_call.1} parent=1 // pred_fallthru
      _
    %v26 = vld [vmem:[#allocation2] sm:$0xff]
    %v27 = vld [vmem:[#allocation2 + $0x8] sm:$0xff]
    %v28 = vld [vmem:[%s1] sm:$0x3]
    %vm29 = vcmask 261120
    %v30 = vsel %vm29, %v26, 0.0
    %31 = vadd.xlane.f32.xlu0 %v30
    %v32 = vpop.xlane.xlu0 %31
    %v33 = vsel %vm29, %v27, 0.0
    %34 = vadd.xlane.f32.xlu0 %v33
    %v35 = vpop.xlane.xlu0 %34
    %v36 = vrcp.pop 32.0
    %v37 = vmul.f32 %v32, %v36
    %v38 = vmul.f32 %v35, %v36
    %v39 = vsub.f32 %v26, %v37
    %v40 = vsub.f32 %v27, %v38
    %v41 = vmul.f32 %v39, %v39
    %v42 = vmul.f32 %v40, %v40
    %v43 = vsel %vm29, %v41, 0.0
    %44 = vadd.xlane.f32.xlu0 %v43
    %v45 = vpop.xlane.xlu0 %44
    %v46 = vsel %vm29, %v42, 0.0
    %47 = vadd.xlane.f32.xlu0 %v46
    %v48 = vpop.xlane.xlu0 %47
    %v49 = vmul.f32 %v45, 0.032258064
    %v50 = vmul.f32 %v48, 0.032258064
    %v51 = vrsqrt.pop %v49
    %v52 = vmul.f32 %v49, %v51
    %vm53 = vcmp.eq.f32.partialorder %v49, inf
    %v54 = vsel %vm53, %v49, %v52
    %vm55 = vcmp.eq.f32.partialorder %v49, 0.0
    %v56 = vand.u32 %v49, 2147483648
    %v57 = vsel %vm55, %v56, %v54
    %v58 = vrsqrt.pop %v50
    %v59 = vmul.f32 %v50, %v58
    %vm60 = vcmp.eq.f32.partialorder %v50, inf
    %v61 = vsel %vm60, %v50, %v59
    %vm62 = vcmp.eq.f32.partialorder %v50, 0.0
    %v63 = vand.u32 %v50, 2147483648
    %v64 = vsel %vm62, %v63, %v61
    %v65 = vadd.f32 %v57, 1e-06
    %v66 = vadd.f32 %v64, 1e-06
    %v67 = vrcp.pop %v65
    %v68 = vrcp.pop %v66
    %v69 = vmul.f32 %v39, %v67
    %v70 = vmul.f32 %v40, %v68
    %v71 = vlaneseq
    %v72 = vshrl.u32 %v71, 7
    %v73 = vsub.s32 0, %v72
    %v74 = vrot.slane %v28, %v73
    %v75 = vmul.f32 %v74, %v69
    %v76 = vmul.f32 %v74, %v70
    %v77 = vlaneseq
    %v78 = vshrl.u32 %v77, 7
    %v79 = vsub.s32 1, %v78
    %v80 = vrot.slane %v28, %v79
    %v81 = vadd.f32 %v75, %v80
    %v82 = vadd.f32 %v76, %v80
    %83 = vst.msk [vmem:[#allocation5] sm:$0xff] %vm29, %v81
    %84 = vst.msk [vmem:[#allocation5 + $0x8] sm:$0xff] %vm29, %v82
    // Predicated region
    $region14: #{tpu_custom_call.1} parent=1 // pred_check
      _
    $region15: #{tpu_custom_call.1} parent=1 // pred_check_branch
      %86 = sbr.rel (0) target = $region17
    $region16: #{tpu_custom_call.1} parent=1 // pred_region
      %s88 = ssub.s32 256, 256
      %89 = vsyncadd [#allocation4], %s88
      %s90 = sshll.u32 [#allocation5], 4
      %s91 = int_to_ptr.vmem [resolvable:$true] %s90
      %96 = dma.vmem_to_hbm [thread:$0]  %s91, 256, %s2, [#allocation4], 128, 128, 8
    $region17: #{tpu_custom_call.1} parent=1 // pred_fallthru
      _
    // Predicated region
    $region18: #{tpu_custom_call.1} parent=1 // pred_check
      _
    $region19: #{tpu_custom_call.1} parent=1 // pred_check_branch
      %98 = sbr.rel (0) target = $region21
    $region20: #{tpu_custom_call.1} parent=1 // pred_region
      %99 = dma.done [#allocation4], 256
    $region21: #{tpu_custom_call.1} parent=1 // pred_fallthru
      _
    %100 = vsyncpa [#allocation3], 1
    %101 = vsyncpa [#allocation4], 1

</llo_original>
